<compile_context>
chip_gen: v6e
topology: v6e:2x2x1
jax: 0.10.0
libtpu: 0.0.40
codegen_flags: <defaults>
</compile_context>

<pallas_src>
import functools

import jax
import jax.numpy as jnp
import numpy as np
from jax.experimental import pallas as pl
from jax.experimental.pallas import tpu as pltpu


_LANE_ALIGN = 256              # v6e/v7x MXU is 2x 256x256; also satisfies (8,128)
_FUSED_MAX_DIM = 1024          # padded N up to which the whole power chain stays in VMEM
_VMEM_CAP = 56 * 1024 * 1024   # stay under v7x's 64 MiB per-TensorCore VMEM


def _round_up(x, m):
    return ((x + m - 1) // m) * m


def _concrete_max_abs(x):
    """Max |x| as a Python float if x is concrete (not a tracer), else None."""
    try:
        return float(jnp.max(jnp.abs(x)))
    except Exception:  # tracer under jit -> cannot gate on values; caller keeps f32
        return None


# ---------------------------------------------------------------------------
# Tiled MXU matmul (fallback path for large graphs)
# ---------------------------------------------------------------------------
def _matmul_kernel(a_ref, b_ref, o_ref):
    # Reduction over grid axis 2 (k, innermost): the (i, j) output block stays
    # resident in VMEM across k, so we accumulate straight into o_ref (f32).
    @pl.when(pl.program_id(2) == 0)
    def _():
        o_ref[...] = jnp.zeros_like(o_ref)

    o_ref[...] += jnp.dot(a_ref[...], b_ref[...],
                          preferred_element_type=jnp.float32)


def _b_block_spec(tk, tn):
    """B changes every k step -> ask for 3-deep buffering if supported."""
    idx = lambda i, j, k: (k, j)
    try:
        return pl.BlockSpec((tk, tn), idx, pipeline_mode=pl.Buffered(3))
    except TypeError:
        return pl.BlockSpec((tk, tn), idx)


def matmul_pallas(a, b, *, tm=1024, tn=1024, tk=512, allow_bf16=True):
    """C = A @ B on the MXU. Pads to tile multiples with zeros (exact for matmul)."""
    M, Kc = a.shape
    Kc2, N = b.shape
    assert Kc == Kc2

    a = a.astype(jnp.float32)
    b = b.astype(jnp.float32)

    # bf16 MXU path: exact when operands are integer-valued and <= 256 (bf16 has an
    # 8-bit mantissa); adjacency powers are integer counts, so this is a pure win
    # whenever the value range permits. Otherwise keep f32 operands.
    use_bf16 = False
    if allow_bf16:
        ma, mb = _concrete_max_abs(a), _concrete_max_abs(b)
        if ma is not None and mb is not None and ma <= 256.0 and mb <= 256.0:
            use_bf16 = True
    in_dtype = jnp.bfloat16 if use_bf16 else jnp.float32
    in_bytes = 2 if use_bf16 else 4

    # Cap tiles at the 256-aligned problem size so small inputs stay small.
    tm = min(tm, _round_up(M, _LANE_ALIGN))
    tn = min(tn, _round_up(N, _LANE_ALIGN))
    tk = min(tk, _round_up(Kc, _LANE_ALIGN))

    Mp, Kp, Np = _round_up(M, tm), _round_up(Kc, tk), _round_up(N, tn)

    # v7x has 2 TensorCores; make sure the 'parallel' axes expose >= 2 blocks when the
    # problem is large enough so both cores get work.
    if Mp // tm == 1 and Np // tn == 1 and tm >= 2 * _LANE_ALIGN:
        tm = _round_up((tm + 1) // 2, _LANE_ALIGN)
        Mp = _round_up(M, tm)

    a = a.astype(in_dtype)
    b = b.astype(in_dtype)
    if (Mp, Kp) != (M, Kc):
        a = jnp.pad(a, ((0, Mp - M), (0, Kp - Kc)))
    if (Kp, Np) != (Kc, N):
        b = jnp.pad(b, ((0, Kp - Kc), (0, Np - N)))

    grid = (Mp // tm, Np // tn, Kp // tk)

    # VMEM budget derived from the tiles (A double-buffered, B up to triple-buffered,
    # resident f32 output double-buffered) with 2x headroom, capped for v7x.
    est = 2 * tm * tk * in_bytes + 3 * tk * tn * in_bytes + 2 * tm * tn * 4
    vmem_limit = int(min(_VMEM_CAP, max(2 * est, 32 * 1024 * 1024)))

    cost = pl.CostEstimate(
        flops=2 * Mp * Np * Kp,
        transcendentals=0,
        bytes_accessed=(Mp * Kp + Kp * Np) * in_bytes + Mp * Np * 4,
    )

    out = pl.pallas_call(
        _matmul_kernel,
        out_shape=jax.ShapeDtypeStruct((Mp, Np), jnp.float32),
        grid_spec=pltpu.PrefetchScalarGridSpec(
            num_scalar_prefetch=0,
            grid=grid,
            in_specs=[
                pl.BlockSpec((tm, tk), lambda i, j, k: (i, k)),
                _b_block_spec(tk, tn),
            ],
            out_specs=pl.BlockSpec((tm, tn), lambda i, j, k: (i, j)),
        ),
        compiler_params=pltpu.CompilerParams(
            dimension_semantics=("parallel", "parallel", "arbitrary"),
            vmem_limit_bytes=vmem_limit,
        ),
        cost_estimate=cost,
    )(a, b)

    if (Mp, Np) != (M, N):
        out = out[:M, :N]
    return out


# ---------------------------------------------------------------------------
# Fused in-VMEM matrix power (fast path for small/medium graphs)
# ---------------------------------------------------------------------------
def _fused_power_kernel(a_ref, o_ref, *, K):
    # Whole (padded) adjacency lives in VMEM; the repeated-squaring chain runs
    # entirely on-chip, so only the final A^K is written back to HBM.
    base = a_ref[...]
    result = None
    k = K
    while k > 0:
        if k & 1:
            result = base if result is None else jnp.dot(
                result, base, preferred_element_type=jnp.float32)
        k >>= 1
        if k:
            base = jnp.dot(base, base, preferred_element_type=jnp.float32)
    o_ref[...] = result


def matrix_power_fused_pallas(adj, K):
    N = adj.shape[0]
    Np = _round_up(N, 128)  # (8,128) alignment; keeps small graphs small
    a = adj.astype(jnp.float32)
    if Np != N:
        a = jnp.pad(a, ((0, Np - N), (0, Np - N)))

    n_matmuls = max(1, (K.bit_length() - 1) + (bin(K).count("1") - 1))
    cost = pl.CostEstimate(
        flops=2 * Np * Np * Np * n_matmuls,
        transcendentals=0,
        bytes_accessed=2 * Np * Np * 4,
    )
    vmem_limit = int(min(_VMEM_CAP, max(12 * Np * Np * 4, 32 * 1024 * 1024)))

    out = pl.pallas_call(
        functools.partial(_fused_power_kernel, K=K),
        out_shape=jax.ShapeDtypeStruct((Np, Np), jnp.float32),
        grid_spec=pltpu.PrefetchScalarGridSpec(
            num_scalar_prefetch=0,
            grid=(1,),
            in_specs=[pl.BlockSpec((Np, Np), lambda i: (0, 0))],
            out_specs=pl.BlockSpec((Np, Np), lambda i: (0, 0)),
        ),
        compiler_params=pltpu.CompilerParams(vmem_limit_bytes=vmem_limit),
        cost_estimate=cost,
    )(a)

    if Np != N:
        out = out[:N, :N]
    return out


def matrix_power_pallas(adj, K):
    """adj^K. Fused in-VMEM chain when it fits; tiled MXU matmuls otherwise."""
    if K <= 1:
        return adj.astype(jnp.float32)
    N = adj.shape[0]
    if _round_up(N, 128) <= _FUSED_MAX_DIM:
        return matrix_power_fused_pallas(adj, K)
    # Large graphs: repeated squaring with tiled MXU matmuls (HBM between steps).
    result, base, k = None, adj.astype(jnp.float32), K
    while k > 0:
        if k & 1:
            result = base if result is None else matmul_pallas(result, base)
        k >>= 1
        if k:
            base = matmul_pallas(base, base)
    return result


def edge_index_to_dense(edge_index, num_nodes):
    # Equivalent of SparseTensor.from_edge_index(adj1); sp.set_value(None)
    # (each stored edge contributes an implicit value of 1.0).
    # TODO(synk): for very large graphs a sorted-COO / segment-sum construction (or
    # staying sparse and densifying tile-by-tile) avoids the O(N^2) dense scatter.
    row, col = edge_index[0], edge_index[1]
    adj = jnp.zeros((num_nodes, num_nodes), jnp.float32)
    adj = adj.at[row, col].add(1.0)
    return adj


class KGINPallas:
    """Pallas/JAX re-implementation of the KGIN forward pass."""

    def __init__(self, K):
        self.K = K  # torch __init__ stores only args and K (no parameters)

    def __call__(self, x, adj1):
        num_nodes = x.shape[0]
        sp_index = edge_index_to_dense(adj1, num_nodes)
        # k_adj = sp_index ; for _ in range(K-1): k_adj = matmul(k_adj, sp_index)
        # == sp_index^K (repeated squaring; exact for integer-valued counts).
        k_adj = matrix_power_pallas(sp_index, self.K)
        # TODO(synk): `x.index_add_(0, id, x_id)` in the reference uses undefined
        # names `id` / `x_id`; no well-defined semantics to translate, so x is
        # passed through unmodified.
        return k_adj, x


if __name__ == "__main__":
    key = jax.random.PRNGKey(0)

    # --- KGIN forward (fused in-VMEM power path) ---
    N, E, D, K = 128, 256, 32, 3
    k1, k2, k3, k4, k5 = jax.random.split(key, 5)
    src = jax.random.randint(k1, (E,), 0, N, dtype=jnp.int32)
    dst = jax.random.randint(k2, (E,), 0, N, dtype=jnp.int32)
    adj1 = jnp.stack([src, dst], axis=0)       # edge_index, shape [2, E]
    x = jax.random.normal(k3, (N, D), jnp.float32)

    model = KGINPallas(K=K)
    k_adj, x_out = model(x, adj1)
    jax.block_until_ready((k_adj, x_out))

    # plain-JAX reference for the K-hop adjacency (chained, as in the torch module)
    ref = edge_index_to_dense(adj1, N)
    acc = ref
    for _ in range(K - 1):
        acc = acc @ ref
    assert jnp.allclose(k_adj, acc, atol=1e-3, rtol=1e-3)
    assert jnp.allclose(x_out, x)

    # --- tiled MXU matmul path (exercised directly with small integer matrices) ---
    A = jax.random.randint(k4, (192, 320), 0, 4).astype(jnp.float32)
    B = jax.random.randint(k5, (320, 256), 0, 4).astype(jnp.float32)
    ref_mm = A @ B
    out_bf16 = matmul_pallas(A, B)                     # bf16 operand path (exact here)
    out_f32 = matmul_pallas(A, B, allow_bf16=False)    # f32 operand path
    jax.block_until_ready((out_bf16, out_f32))
    assert jnp.allclose(out_bf16, ref_mm, atol=1e-3, rtol=1e-3)
    assert jnp.allclose(out_f32, ref_mm, atol=1e-3, rtol=1e-3)

    print("KERNEL_OK")
</pallas_src>

<mosaic_0001>
module attributes {stable_mosaic.version = 11 : i64} {
  func.func @_fused_power_kernel(%arg0: i32, %arg1: memref<128x128xf32, #tpu.memory_space<vmem>>, %arg2: memref<128x128xf32, #tpu.memory_space<vmem>>) attributes {dimension_semantics = [#tpu.dimension_semantics<arbitrary>], iteration_bounds = array<i64: 1>, scalar_prefetch = 0 : i64, scratch_operands = 0 : i64, tpu.core_type = #tpu.core_type<tc>, window_params = [{pipeline_mode = #tpu.pipeline_mode<synchronous>, transform_indices = @transform_0, window_bounds = array<i64: 128, 128>}, {pipeline_mode = #tpu.pipeline_mode<synchronous>, transform_indices = @transform_1, window_bounds = array<i64: 128, 128>}]} {
    %c0 = arith.constant 0 : index
    %c0_0 = arith.constant 0 : index
    %0 = vector.load %arg1[%c0, %c0_0] : memref<128x128xf32, #tpu.memory_space<vmem>>, vector<128x128xf32>
    %cst = arith.constant dense<0.000000e+00> : vector<128x128xf32>
    %1 = tpu.matmul %0, %0, %cst {dimension_numbers = #tpu.dot_dimension_numbers<[1], [0], [0], [1], [0, 0, 1, 1], [], []>} : vector<128x128xf32>, vector<128x128xf32>, vector<128x128xf32> -> vector<128x128xf32>
    %cst_1 = arith.constant dense<0.000000e+00> : vector<128x128xf32>
    %2 = tpu.matmul %0, %1, %cst_1 {dimension_numbers = #tpu.dot_dimension_numbers<[1], [0], [0], [1], [0, 0, 1, 1], [], []>} : vector<128x128xf32>, vector<128x128xf32>, vector<128x128xf32> -> vector<128x128xf32>
    %c0_2 = arith.constant 0 : index
    %c0_3 = arith.constant 0 : index
    %3 = vector.load %arg2[%c0_2, %c0_3] : memref<128x128xf32, #tpu.memory_space<vmem>>, vector<128x128xf32>
    tpu.vector_store %arg2[%c0_2, %c0_3], %2 {strides = array<i32>} : memref<128x128xf32, #tpu.memory_space<vmem>>, vector<128x128xf32>,
    return
  }
  func.func @transform_0(%arg0: i32) -> (i32, i32) {
    %c0_i32 = arith.constant 0 : i32
    %c0_i32_0 = arith.constant 0 : i32
    %c0_i32_1 = arith.constant 0 : i32
    return %c0_i32, %c0_i32_0 : i32, i32
  }
  func.func @transform_1(%arg0: i32) -> (i32, i32) {
    %c0_i32 = arith.constant 0 : i32
    %c0_i32_0 = arith.constant 0 : i32
    %c0_i32_1 = arith.constant 0 : i32
    return %c0_i32, %c0_i32_0 : i32, i32
  }
}

</mosaic_0001>

<llo_original>
// kernel: tpu_custom_call.1
$region0: #{tpu_custom_call.1}
  #allocation0 [shape = 'u32[]', space=smem, size = 0x4, offset = 0x4, fixed_abs, tag = 'smem constant byte address 0x4 - core index']
  #allocation1 [shape = 'u32[144,128]{1,0:T(1,128)}', space=vmem, size = 0x12000, scoped, tag = 'internal scratch']
  %s0 = inlined_call_operand.hbm [shape: f32[128,128], index: 0, kind: input, shape index: {}]
  %s1 = inlined_call_operand.hbm [shape: f32[128,128], index: 1, kind: output, shape index: {}]
  %s2 = sld [smem:[#allocation0]]
  $region18: #{tpu_custom_call.1} parent=0
    _
  %s4 = ssub.s32 1, %s2
  %s5 = scalar_select 0, %s4, %s2
  $region1: #{tpu_custom_call.1} parent=0
    #allocation2 [shape = 'u8[65536]{0}', space=vmem, size = 0x10000, scoped, tag = 'input window, operand 0, single buffered']
    #allocation3 [shape = 's32[1]{0}', space=sflag, size = 0x4, scoped, tag = 'scoped memory for tpu_custom_call.1']
    #allocation4 [shape = 's32[1]{0}', space=sflag, size = 0x4, scoped, tag = 'scoped memory for tpu_custom_call.1']
    #allocation5 [shape = 'u8[65536]{0}', space=vmem, size = 0x10000, scoped, tag = 'output window, operand 0, single buffered']
    %6 = vsyncpa [#allocation3], 0
    %7 = vsyncpa [#allocation4], 0
    // Predicated region
    $region2: #{tpu_custom_call.1} parent=1 // pred_check
      _
    $region3: #{tpu_custom_call.1} parent=1 // pred_check_branch
      %9 = sbr.rel (0) target = $region5
    $region4: #{tpu_custom_call.1} parent=1 // pred_region
      %s11 = ssub.s32 2048, 2048
      %12 = vsyncadd [#allocation3], %s11
      %s13 = sshll.u32 [#allocation2], 4
      %s14 = int_to_ptr.vmem [resolvable:$true] %s13
      %19 = dma.hbm_to_vmem [thread:$0]  %s0, 2048, %s14, [#allocation3], 128, 128, 8
    $region5: #{tpu_custom_call.1} parent=1 // pred_fallthru
      _
    // Predicated region
    $region6: #{tpu_custom_call.1} parent=1 // pred_check
      _
    $region7: #{tpu_custom_call.1} parent=1 // pred_check_branch
      %21 = sbr.rel (0) target = $region9
    $region8: #{tpu_custom_call.1} parent=1 // pred_region
      %22 = dma.done [#allocation3], 2048
    $region9: #{tpu_custom_call.1} parent=1 // pred_fallthru
      _
    %v23 = vld [vmem:[#allocation2] sm:$0xff]
    %v24 = vld [vmem:[#allocation2 + $0x8] sm:$0xff]
    %v25 = vld [vmem:[#allocation2 + $0x10] sm:$0xff]
    %v26 = vld [vmem:[#allocation2 + $0x18] sm:$0xff]
    %v27 = vld [vmem:[#allocation2 + $0x20] sm:$0xff]
    %v28 = vld [vmem:[#allocation2 + $0x28] sm:$0xff]
    %v29 = vld [vmem:[#allocation2 + $0x30] sm:$0xff]
    %v30 = vld [vmem:[#allocation2 + $0x38] sm:$0xff]
    %v31 = vld [vmem:[#allocation2 + $0x40] sm:$0xff]
    %v32 = vld [vmem:[#allocation2 + $0x48] sm:$0xff]
    %v33 = vld [vmem:[#allocation2 + $0x50] sm:$0xff]
    %v34 = vld [vmem:[#allocation2 + $0x58] sm:$0xff]
    %v35 = vld [vmem:[#allocation2 + $0x60] sm:$0xff]
    %v36 = vld [vmem:[#allocation2 + $0x68] sm:$0xff]
    %v37 = vld [vmem:[#allocation2 + $0x70] sm:$0xff]
    %v38 = vld [vmem:[#allocation2 + $0x78] sm:$0xff]
    %39 = vmatprep.subr.mxu0 0.0
    %40 = vmatpush1.msra.mxu0 %v38
    %41 = vmatprep.subr.mxu0 0.0
    %42 = vmatpush1.msra.mxu0 %v37
    %43 = vmatprep.subr.mxu0 0.0
    %44 = vmatpush1.msra.mxu0 %v36
    %45 = vmatprep.subr.mxu0 0.0
    %46 = vmatpush1.msra.mxu0 %v35
    %47 = vmatprep.subr.mxu0 0.0
    %48 = vmatpush1.msra.mxu0 %v34
    %49 = vmatprep.subr.mxu0 0.0
    %50 = vmatpush1.msra.mxu0 %v33
    %51 = vmatprep.subr.mxu0 0.0
    %52 = vmatpush1.msra.mxu0 %v32
    %53 = vmatprep.subr.mxu0 0.0
    %54 = vmatpush1.msra.mxu0 %v31
    %55 = vmatprep.subr.mxu0 0.0
    %56 = vmatpush1.msra.mxu0 %v30
    %57 = vmatprep.subr.mxu0 0.0
    %58 = vmatpush1.msra.mxu0 %v29
    %59 = vmatprep.subr.mxu0 0.0
    %60 = vmatpush1.msra.mxu0 %v28
    %61 = vmatprep.subr.mxu0 0.0
    %62 = vmatpush1.msra.mxu0 %v27
    %63 = vmatprep.subr.mxu0 0.0
    %64 = vmatpush1.msra.mxu0 %v26
    %65 = vmatprep.subr.mxu0 0.0
    %66 = vmatpush1.msra.mxu0 %v25
    %67 = vmatprep.subr.mxu0 0.0
    %68 = vmatpush1.msra.mxu0 %v24
    %69 = vmatprep.subr.mxu0 0.0
    %70 = vmatpush1.msra.mxu0 %v23
    %71 = vmatprep.subr.mxu0 0.0
    %72 = vmatpush2.msra.mxu0 0.0
    %73 = vmatprep.subr.mxu0 0.0
    %74 = vmatpush2.msra.mxu0 0.0
    %75 = vmatprep.subr.mxu0 0.0
    %76 = vmatpush2.msra.mxu0 0.0
    %77 = vmatprep.subr.mxu0 0.0
    %78 = vmatpush2.msra.mxu0 0.0
    %79 = vmatprep.subr.mxu0 0.0
    %80 = vmatpush2.msra.mxu0 0.0
    %81 = vmatprep.subr.mxu0 0.0
    %82 = vmatpush2.msra.mxu0 0.0
    %83 = vmatprep.subr.mxu0 0.0
    %84 = vmatpush2.msra.mxu0 0.0
    %85 = vmatprep.subr.mxu0 0.0
    %86 = vmatpush2.msra.mxu0 0.0
    %87 = vmatprep.subr.mxu0 0.0
    %88 = vmatpush2.msra.mxu0 0.0
    %89 = vmatprep.subr.mxu0 0.0
    %90 = vmatpush2.msra.mxu0 0.0
    %91 = vmatprep.subr.mxu0 0.0
    %92 = vmatpush2.msra.mxu0 0.0
    %93 = vmatprep.subr.mxu0 0.0
    %94 = vmatpush2.msra.mxu0 0.0
    %95 = vmatprep.subr.mxu0 0.0
    %96 = vmatpush2.msra.mxu0 0.0
    %97 = vmatprep.subr.mxu0 0.0
    %98 = vmatpush2.msra.mxu0 0.0
    %99 = vmatprep.subr.mxu0 0.0
    %100 = vmatpush2.msra.mxu0 0.0
    %101 = vmatprep.subr.mxu0 0.0
    %102 = vmatpush2.msra.mxu0 0.0
    %103 = vmatprep.mubr.f32.mxu0 0.0
    %104 = vmatmul.mubr.f32.gmra.mxu0 %v23
    %v105 = vpop.f32.mrf.mxu0
    %v106 = vadd.f32 0.0, %v105
    %v107 = vpop.f32.mrf.mxu0
    %108 = vmatprep.mubr.f32.mxu0 0.0
    %109 = vmatmul.mubr.f32.gmra.mxu0 %v24
    %v110 = vpop.f32.mrf.mxu0
    %v111 = vadd.f32 0.0, %v110
    %v112 = vpop.f32.mrf.mxu0
    %113 = vmatprep.mubr.f32.mxu0 0.0
    %114 = vmatmul.mubr.f32.gmra.mxu0 %v25
    %v115 = vpop.f32.mrf.mxu0
    %v116 = vadd.f32 0.0, %v115
    %v117 = vpop.f32.mrf.mxu0
    %118 = vmatprep.mubr.f32.mxu0 0.0
    %119 = vmatmul.mubr.f32.gmra.mxu0 %v26
    %v120 = vpop.f32.mrf.mxu0
    %v121 = vadd.f32 0.0, %v120
    %v122 = vpop.f32.mrf.mxu0
    %123 = vmatprep.mubr.f32.mxu0 0.0
    %124 = vmatmul.mubr.f32.gmra.mxu0 %v27
    %v125 = vpop.f32.mrf.mxu0
    %v126 = vadd.f32 0.0, %v125
    %v127 = vpop.f32.mrf.mxu0
    %128 = vmatprep.mubr.f32.mxu0 0.0
    %129 = vmatmul.mubr.f32.gmra.mxu0 %v28
    %v130 = vpop.f32.mrf.mxu0
    %v131 = vadd.f32 0.0, %v130
    %v132 = vpop.f32.mrf.mxu0
    %133 = vmatprep.mubr.f32.mxu0 0.0
    %134 = vmatmul.mubr.f32.gmra.mxu0 %v29
    %v135 = vpop.f32.mrf.mxu0
    %v136 = vadd.f32 0.0, %v135
    %v137 = vpop.f32.mrf.mxu0
    %138 = vmatprep.mubr.f32.mxu0 0.0
    %139 = vmatmul.mubr.f32.gmra.mxu0 %v30
    %v140 = vpop.f32.mrf.mxu0
    %v141 = vadd.f32 0.0, %v140
    %v142 = vpop.f32.mrf.mxu0
    %143 = vmatprep.mubr.f32.mxu0 0.0
    %144 = vmatmul.mubr.f32.gmra.mxu0 %v31
    %v145 = vpop.f32.mrf.mxu0
    %v146 = vadd.f32 0.0, %v145
    %v147 = vpop.f32.mrf.mxu0
    %148 = vmatprep.mubr.f32.mxu0 0.0
    %149 = vmatmul.mubr.f32.gmra.mxu0 %v32
    %v150 = vpop.f32.mrf.mxu0
    %v151 = vadd.f32 0.0, %v150
    %v152 = vpop.f32.mrf.mxu0
    %153 = vmatprep.mubr.f32.mxu0 0.0
    %154 = vmatmul.mubr.f32.gmra.mxu0 %v33
    %v155 = vpop.f32.mrf.mxu0
    %v156 = vadd.f32 0.0, %v155
    %v157 = vpop.f32.mrf.mxu0
    %158 = vmatprep.mubr.f32.mxu0 0.0
    %159 = vmatmul.mubr.f32.gmra.mxu0 %v34
    %v160 = vpop.f32.mrf.mxu0
    %v161 = vadd.f32 0.0, %v160
    %v162 = vpop.f32.mrf.mxu0
    %163 = vmatprep.mubr.f32.mxu0 0.0
    %164 = vmatmul.mubr.f32.gmra.mxu0 %v35
    %v165 = vpop.f32.mrf.mxu0
    %v166 = vadd.f32 0.0, %v165
    %v167 = vpop.f32.mrf.mxu0
    %168 = vmatprep.mubr.f32.mxu0 0.0
    %169 = vmatmul.mubr.f32.gmra.mxu0 %v36
    %v170 = vpop.f32.mrf.mxu0
    %v171 = vadd.f32 0.0, %v170
    %v172 = vpop.f32.mrf.mxu0
    %173 = vmatprep.mubr.f32.mxu0 0.0
    %174 = vmatmul.mubr.f32.gmra.mxu0 %v37
    %v175 = vpop.f32.mrf.mxu0
    %v176 = vadd.f32 0.0, %v175
    %v177 = vpop.f32.mrf.mxu0
    %178 = vmatprep.mubr.f32.mxu0 0.0
    %179 = vmatmul.mubr.f32.gmra.mxu0 %v38
    %v180 = vpop.f32.mrf.mxu0
    %v181 = vadd.f32 0.0, %v180
    %v182 = vpop.f32.mrf.mxu0
    %183 = vdwg.mxu0
    %184 = vmatprep.subr.mxu0 0.0
    %185 = vmatpush1.msra.mxu0 %v181
    %186 = vmatprep.subr.mxu0 0.0
    %187 = vmatpush1.msra.mxu0 %v176
    %188 = vmatprep.subr.mxu0 0.0
    %189 = vmatpush1.msra.mxu0 %v171
    %190 = vmatprep.subr.mxu0 0.0
    %191 = vmatpush1.msra.mxu0 %v166
    %192 = vmatprep.subr.mxu0 0.0
    %193 = vmatpush1.msra.mxu0 %v161
    %194 = vmatprep.subr.mxu0 0.0
    %195 = vmatpush1.msra.mxu0 %v156
    %196 = vmatprep.subr.mxu0 0.0
    %197 = vmatpush1.msra.mxu0 %v151
    %198 = vmatprep.subr.mxu0 0.0
    %199 = vmatpush1.msra.mxu0 %v146
    %200 = vmatprep.subr.mxu0 0.0
    %201 = vmatpush1.msra.mxu0 %v141
    %202 = vmatprep.subr.mxu0 0.0
    %203 = vmatpush1.msra.mxu0 %v136
    %204 = vmatprep.subr.mxu0 0.0
    %205 = vmatpush1.msra.mxu0 %v131
    %206 = vmatprep.subr.mxu0 0.0
    %207 = vmatpush1.msra.mxu0 %v126
    %208 = vmatprep.subr.mxu0 0.0
    %209 = vmatpush1.msra.mxu0 %v121
    %210 = vmatprep.subr.mxu0 0.0
    %211 = vmatpush1.msra.mxu0 %v116
    %212 = vmatprep.subr.mxu0 0.0
    %213 = vmatpush1.msra.mxu0 %v111
    %214 = vmatprep.subr.mxu0 0.0
    %215 = vmatpush1.msra.mxu0 %v106
    %216 = vmatprep.subr.mxu0 0.0
    %217 = vmatpush2.msra.mxu0 0.0
    %218 = vmatprep.subr.mxu0 0.0
    %219 = vmatpush2.msra.mxu0 0.0
    %220 = vmatprep.subr.mxu0 0.0
    %221 = vmatpush2.msra.mxu0 0.0
    %222 = vmatprep.subr.mxu0 0.0
    %223 = vmatpush2.msra.mxu0 0.0
    %224 = vmatprep.subr.mxu0 0.0
    %225 = vmatpush2.msra.mxu0 0.0
    %226 = vmatprep.subr.mxu0 0.0
    %227 = vmatpush2.msra.mxu0 0.0
    %228 = vmatprep.subr.mxu0 0.0
    %229 = vmatpush2.msra.mxu0 0.0
    %230 = vmatprep.subr.mxu0 0.0
    %231 = vmatpush2.msra.mxu0 0.0
    %232 = vmatprep.subr.mxu0 0.0
    %233 = vmatpush2.msra.mxu0 0.0
    %234 = vmatprep.subr.mxu0 0.0
    %235 = vmatpush2.msra.mxu0 0.0
    %236 = vmatprep.subr.mxu0 0.0
    %237 = vmatpush2.msra.mxu0 0.0
    %238 = vmatprep.subr.mxu0 0.0
    %239 = vmatpush2.msra.mxu0 0.0
    %240 = vmatprep.subr.mxu0 0.0
    %241 = vmatpush2.msra.mxu0 0.0
    %242 = vmatprep.subr.mxu0 0.0
    %243 = vmatpush2.msra.mxu0 0.0
    %244 = vmatprep.subr.mxu0 0.0
    %245 = vmatpush2.msra.mxu0 0.0
    %246 = vmatprep.subr.mxu0 0.0
    %247 = vmatpush2.msra.mxu0 0.0
    %248 = vmatprep.mubr.f32.mxu0 0.0
    %249 = vmatmul.mubr.f32.gmra.mxu0 %v23
    %v250 = vpop.f32.mrf.mxu0
    %v251 = vadd.f32 0.0, %v250
    %v252 = vpop.f32.mrf.mxu0
    %253 = vmatprep.mubr.f32.mxu0 0.0
    %254 = vmatmul.mubr.f32.gmra.mxu0 %v24
    %v255 = vpop.f32.mrf.mxu0
    %v256 = vadd.f32 0.0, %v255
    %v257 = vpop.f32.mrf.mxu0
    %258 = vmatprep.mubr.f32.mxu0 0.0
    %259 = vmatmul.mubr.f32.gmra.mxu0 %v25
    %v260 = vpop.f32.mrf.mxu0
    %v261 = vadd.f32 0.0, %v260
    %v262 = vpop.f32.mrf.mxu0
    %263 = vmatprep.mubr.f32.mxu0 0.0
    %264 = vmatmul.mubr.f32.gmra.mxu0 %v26
    %v265 = vpop.f32.mrf.mxu0
    %v266 = vadd.f32 0.0, %v265
    %v267 = vpop.f32.mrf.mxu0
    %268 = vmatprep.mubr.f32.mxu0 0.0
    %269 = vmatmul.mubr.f32.gmra.mxu0 %v27
    %v270 = vpop.f32.mrf.mxu0
    %v271 = vadd.f32 0.0, %v270
    %v272 = vpop.f32.mrf.mxu0
    %273 = vmatprep.mubr.f32.mxu0 0.0
    %274 = vmatmul.mubr.f32.gmra.mxu0 %v28
    %v275 = vpop.f32.mrf.mxu0
    %v276 = vadd.f32 0.0, %v275
    %v277 = vpop.f32.mrf.mxu0
    %278 = vmatprep.mubr.f32.mxu0 0.0
    %279 = vmatmul.mubr.f32.gmra.mxu0 %v29
    %v280 = vpop.f32.mrf.mxu0
    %v281 = vadd.f32 0.0, %v280
    %v282 = vpop.f32.mrf.mxu0
    %283 = vmatprep.mubr.f32.mxu0 0.0
    %284 = vmatmul.mubr.f32.gmra.mxu0 %v30
    %v285 = vpop.f32.mrf.mxu0
    %v286 = vadd.f32 0.0, %v285
    %v287 = vpop.f32.mrf.mxu0
    %288 = vmatprep.mubr.f32.mxu0 0.0
    %289 = vmatmul.mubr.f32.gmra.mxu0 %v31
    %v290 = vpop.f32.mrf.mxu0
    %v291 = vadd.f32 0.0, %v290
    %v292 = vpop.f32.mrf.mxu0
    %293 = vmatprep.mubr.f32.mxu0 0.0
    %294 = vmatmul.mubr.f32.gmra.mxu0 %v32
    %v295 = vpop.f32.mrf.mxu0
    %v296 = vadd.f32 0.0, %v295
    %v297 = vpop.f32.mrf.mxu0
    %298 = vmatprep.mubr.f32.mxu0 0.0
    %299 = vmatmul.mubr.f32.gmra.mxu0 %v33
    %v300 = vpop.f32.mrf.mxu0
    %v301 = vadd.f32 0.0, %v300
    %v302 = vpop.f32.mrf.mxu0
    %303 = vmatprep.mubr.f32.mxu0 0.0
    %304 = vmatmul.mubr.f32.gmra.mxu0 %v34
    %v305 = vpop.f32.mrf.mxu0
    %v306 = vadd.f32 0.0, %v305
    %v307 = vpop.f32.mrf.mxu0
    %308 = vmatprep.mubr.f32.mxu0 0.0
    %309 = vmatmul.mubr.f32.gmra.mxu0 %v35
    %v310 = vpop.f32.mrf.mxu0
    %v311 = vadd.f32 0.0, %v310
    %v312 = vpop.f32.mrf.mxu0
    %313 = vmatprep.mubr.f32.mxu0 0.0
    %314 = vmatmul.mubr.f32.gmra.mxu0 %v36
    %v315 = vpop.f32.mrf.mxu0
    %v316 = vadd.f32 0.0, %v315
    %v317 = vpop.f32.mrf.mxu0
    %318 = vmatprep.mubr.f32.mxu0 0.0
    %319 = vmatmul.mubr.f32.gmra.mxu0 %v37
    %v320 = vpop.f32.mrf.mxu0
    %v321 = vadd.f32 0.0, %v320
    %v322 = vpop.f32.mrf.mxu0
    %323 = vmatprep.mubr.f32.mxu0 0.0
    %324 = vmatmul.mubr.f32.gmra.mxu0 %v38
    %v325 = vpop.f32.mrf.mxu0
    %v326 = vadd.f32 0.0, %v325
    %v327 = vpop.f32.mrf.mxu0
    %328 = vdwg.mxu0
    %329 = vst [vmem:[#allocation5] sm:$0xff] %v251
    %330 = vst [vmem:[#allocation5 + $0x8] sm:$0xff] %v256
    %331 = vst [vmem:[#allocation5 + $0x10] sm:$0xff] %v261
    %332 = vst [vmem:[#allocation5 + $0x18] sm:$0xff] %v266
    %333 = vst [vmem:[#allocation5 + $0x20] sm:$0xff] %v271
    %334 = vst [vmem:[#allocation5 + $0x28] sm:$0xff] %v276
    %335 = vst [vmem:[#allocation5 + $0x30] sm:$0xff] %v281
    %336 = vst [vmem:[#allocation5 + $0x38] sm:$0xff] %v286
    %337 = vst [vmem:[#allocation5 + $0x40] sm:$0xff] %v291
    %338 = vst [vmem:[#allocation5 + $0x48] sm:$0xff] %v296
    %339 = vst [vmem:[#allocation5 + $0x50] sm:$0xff] %v301
    %340 = vst [vmem:[#allocation5 + $0x58] sm:$0xff] %v306
    %341 = vst [vmem:[#allocation5 + $0x60] sm:$0xff] %v311
    %342 = vst [vmem:[#allocation5 + $0x68] sm:$0xff] %v316
    %343 = vst [vmem:[#allocation5 + $0x70] sm:$0xff] %v321
    %344 = vst [vmem:[#allocation5 + $0x78] sm:$0xff] %v326
    // Predicated region
    $region10: #{tpu_custom_call.1} parent=1 // pred_check
      _
    $region11: #{tpu_custom_call.1} parent=1 // pred_check_branch
      %346 = sbr.rel (0) target = $region13
    $region12: #{tpu_custom_call.1} parent=1 // pred_region
      %s348 = ssub.s32 2048, 2048
      %349 = vsyncadd [#allocation4], %s348
      %s350 = sshll.u32 [#allocation5], 4
      %s351 = int_to_ptr.vmem [resolvable:$true] %s350
      %356 = dma.vmem_to_hbm [thread:$0]  %s351, 2048, %s1, [#allocation4], 128, 128, 8
    $region13: #{tpu_custom_call.1} parent=1 // pred_fallthru
      _
    // Predicated region
    $region14: #{tpu_custom_call.1} parent=1 // pred_check
      _
    $region15: #{tpu_custom_call.1} parent=1 // pred_check_branch
      %358 = sbr.rel (0) target = $region17
    $region16: #{tpu_custom_call.1} parent=1 // pred_region
      %359 = dma.done [#allocation4], 2048
    $region17: #{tpu_custom_call.1} parent=1 // pred_fallthru
      _
    %360 = vsyncpa [#allocation3], 1
    %361 = vsyncpa [#allocation4], 1

</llo_original>
